<compile_context>
chip_gen: v6e
topology: v6e:2x2x1
jax: 0.10.0
libtpu: 0.0.40
codegen_flags: <defaults>
</compile_context>

<pallas_src>
import functools

import jax
import jax.numpy as jnp
import numpy as np
from jax.experimental import pallas as pl
from jax.experimental.pallas import tpu as pltpu


def _round_up(a, b):
    return -(-a // b) * b


# Above this im2col-RHS size, switch from the single K = ks^2*Cin contraction to
# ks accumulated K = ks*Cin contractions (one per kernel row) to bound VMEM.
_FULL_CONCAT_RHS_MAX_BYTES = 2 * 1024 * 1024


def _fused_shortcut_kernel(x_ref, *refs, cfgs, W, S):
    """Fused stack of stride-1 'same' Conv2d(+bias)(+ReLU) layers for one image.

    x_ref:  (Cin0_pad, S)  activation, spatial flattened on the lane axis
    refs:   w_0, b_0, ..., w_{L-1}, b_{L-1}, o_ref
            w_i: (Cout_pad, ks*ks*Cin_pad)          for mode "full" / 1x1, or
                 (ks, Cout_pad, ks*Cin_pad)         for mode "dh"
                 column order within a row group is (kw, cin)
            b_i: (Cout_pad, 1) float32
            o_ref: (Cout_pad, S)
    """
    n_layers = len(cfgs)
    o_ref = refs[2 * n_layers]
    act = x_ref[...]                         # (cin_pad, S), compute dtype
    cdt = act.dtype
    mask_cache = {}                          # (halo, dw) -> (1, S+2*halo) mask

    for li, (ks, pad, cin, cout, relu, mode) in enumerate(cfgs):
        w_ref = refs[2 * li]
        bias = refs[2 * li + 1][...]         # (cout_pad, 1) f32, lane-broadcast

        if ks == 1:
            acc = jnp.dot(w_ref[...], act, preferred_element_type=jnp.float32)
        else:
            # In-kernel zero halo: 128-aligned slab so every (dh, dw) tap becomes
            # a static lane-offset slice (no HBM traffic for padding).
            halo = _round_up(pad * (W + 1), 128)
            plen = S + 2 * halo
            z = jnp.zeros((cin, halo), cdt)
            padded = jnp.concatenate([z, act, z], axis=1)       # (cin, plen)

            # Hoisted edge masks: one pre-masked padded buffer per horizontal
            # offset dw.  Masks are built from an iota and cached across layers.
            shifted = {}
            for kw in range(ks):
                dw = kw - pad
                if dw == 0:
                    shifted[dw] = padded
                    continue
                key = (halo, dw)
                if key not in mask_cache:
                    pos = jax.lax.broadcasted_iota(jnp.int32, (1, plen), 1)
                    off = (-halo) % W                  # keep the mod argument >= 0
                    col = (pos + off) % W              # periodic column coordinate
                    ok = (col >= dw) if dw > 0 else (col < W + dw)
                    mask_cache[key] = ok.astype(cdt)
                shifted[dw] = padded * mask_cache[key]

            def row_group(kh):
                # im2col rows for one kernel row: pure static slices, no masking.
                dh = kh - pad
                cols = []
                for kw in range(ks):
                    dw = kw - pad
                    start = halo + dh * W + dw
                    cols.append(shifted[dw][:, start:start + S])
                return jnp.concatenate(cols, axis=0)            # (ks*cin, S)

            if mode == "full":
                # Single MXU contraction, K = ks*ks*cin_pad.
                rhs = jnp.concatenate([row_group(kh) for kh in range(ks)], axis=0)
                acc = jnp.dot(w_ref[...], rhs, preferred_element_type=jnp.float32)
            else:
                # Per-kernel-row accumulation, K = ks*cin_pad (bounded footprint).
                acc = jnp.zeros((cout, S), jnp.float32)
                for kh in range(ks):
                    acc = acc + jnp.dot(w_ref[kh], row_group(kh),
                                        preferred_element_type=jnp.float32)

        acc = acc + bias                                        # (cout,1) broadcast
        if relu:
            acc = jnp.maximum(acc, 0.0)

        if li == n_layers - 1:
            o_ref[...] = acc.astype(o_ref.dtype)
        else:
            act = acc.astype(cdt)            # stays in VMEM/vregs for next layer


def shortcut_conv2d_pallas(x_nchw, cfgs, weights, biases, out_channels):
    """Run the fused ShortcutConv2d stack.  (N, Cin, H, W) -> (N, Cout, H, W)."""
    N, Cin, H, W = x_nchw.shape
    S = H * W
    cdt = weights[0].dtype
    out_dtype = x_nchw.dtype

    cin0_pad = cfgs[0][2]
    cout_pad = cfgs[-1][3]

    # Channel (sublane) zero-pad + cast once in the wrapper; spatial stays flat.
    x = x_nchw.astype(cdt)
    if cin0_pad > Cin:
        x = jnp.pad(x, ((0, 0), (0, cin0_pad - Cin), (0, 0), (0, 0)))
    x = x.reshape(N, cin0_pad, S)

    in_specs = [pl.BlockSpec((None, cin0_pad, S), lambda n: (n, 0, 0))]
    args = [x]
    for w, b in zip(weights, biases):
        in_specs.append(pl.BlockSpec(w.shape, lambda n, nd=w.ndim: (0,) * nd))
        in_specs.append(pl.BlockSpec(b.shape, lambda n: (0, 0)))
        args.extend([w, b])

    kernel = functools.partial(_fused_shortcut_kernel, cfgs=tuple(cfgs), W=W, S=S)

    # Advisory cost estimate so XLA schedules the fused call sensibly.
    flops = sum(2 * ks * ks * cin * cout * S * N
                for (ks, pad, cin, cout, relu, mode) in cfgs)
    bytes_accessed = (x.size * x.dtype.itemsize
                      + sum(a.size * a.dtype.itemsize for a in args[1:])
                      + N * cout_pad * S * out_dtype.itemsize)
    cost = pl.CostEstimate(flops=int(flops), transcendentals=0,
                           bytes_accessed=int(bytes_accessed))

    # Explicit VMEM budget for the fused per-image block (with 2x headroom).
    cdt_b = np.dtype(cdt).itemsize
    vmem_needed = 2 * cin0_pad * S * cdt_b                     # double-buffered input
    vmem_needed += 2 * cout_pad * S * out_dtype.itemsize       # double-buffered output
    vmem_needed += 2 * sum(a.size * a.dtype.itemsize for a in args[1:])
    peak = 0
    for (ks, pad, cin, cout, relu, mode) in cfgs:
        halo = 0 if pad == 0 else _round_up(pad * (W + 1), 128)
        k_grp = ks * ks * cin if mode == "full" else ks * cin
        layer = ks * cin * (S + 2 * halo) * cdt_b              # pre-masked padded copies
        layer += k_grp * S * cdt_b                             # live im2col RHS
        layer += cout * S * 4                                  # f32 accumulator
        layer += cout * S * cdt_b                              # next-layer activation
        peak = max(peak, layer)
    vmem_needed += peak
    try:
        vmem_cap = int(getattr(pltpu.get_tpu_info(), "vmem_capacity_bytes",
                               64 * 1024 * 1024))
    except Exception:
        vmem_cap = 64 * 1024 * 1024
    vmem_limit = int(min(max(32 * 1024 * 1024, 2 * vmem_needed),
                         int(vmem_cap * 0.9)))

    y = pl.pallas_call(
        kernel,
        out_shape=jax.ShapeDtypeStruct((N, cout_pad, S), out_dtype),
        grid_spec=pltpu.PrefetchScalarGridSpec(
            num_scalar_prefetch=0,
            grid=(N,),
            in_specs=in_specs,
            out_specs=pl.BlockSpec((None, cout_pad, S), lambda n: (n, 0, 0)),
        ),
        compiler_params=pltpu.CompilerParams(
            dimension_semantics=("parallel",),
            vmem_limit_bytes=vmem_limit),
        cost_estimate=cost,
    )(*args)

    return y[:, :out_channels].reshape(N, out_channels, H, W)


class ShortcutConv2d:
    """JAX/Pallas re-implementation of mmdet ttf_head's ShortcutConv2d (forward only).

    Parameters follow PyTorch Conv2d default init (U(+-1/sqrt(fan_in))), stored in
    OIHW like the reference module, and additionally packed into padded, MXU-ready
    layouts at construction time.
    """

    def __init__(self, in_channels, out_channels, kernel_sizes, paddings,
                 activation_last=False, key=None, compute_dtype=jnp.bfloat16):
        assert len(kernel_sizes) == len(paddings) and len(kernel_sizes) >= 1
        if key is None:
            key = jax.random.PRNGKey(0)

        self.in_channels = in_channels
        self.out_channels = out_channels
        self.compute_dtype = np.dtype(compute_dtype)
        pad_to = 16 if self.compute_dtype.itemsize < 4 else 8
        self.cout_pad = _round_up(out_channels, pad_to)

        self.kernel_sizes = list(kernel_sizes)
        self.paddings = list(paddings)
        self.relus = []
        self.weights_oihw = []     # (Cout, Cin, KH, KW) for the pure-JAX reference
        self.biases = []           # (Cout,)
        self._layers = []          # packed params + static per-layer config

        n_layers = len(kernel_sizes)
        for i, (ks, pad) in enumerate(zip(kernel_sizes, paddings)):
            # TODO(synk): fused flat-spatial kernel covers stride-1 'same' convs
            # (2*pad == ks-1), which is all ttf_head ever instantiates.
            assert 2 * pad == ks - 1, "fused kernel supports 'same' convs only"
            inc = in_channels if i == 0 else out_channels
            cin_pad = _round_up(inc, pad_to)
            key, kw_key, kb_key = jax.random.split(key, 3)
            fan_in = inc * ks * ks
            bound = float(1.0 / np.sqrt(fan_in))
            w = jax.random.uniform(kw_key, (out_channels, inc, ks, ks),
                                   jnp.float32, -bound, bound)      # OIHW
            b = jax.random.uniform(kb_key, (out_channels,), jnp.float32,
                                   -bound, bound)
            relu = i < n_layers - 1 or activation_last

            self.weights_oihw.append(w)
            self.biases.append(b)
            self.relus.append(relu)

            # Zero-pad Cin/Cout to the sublane tile, interleaving the zero Cin
            # columns per (kh, kw) group (keeping (kh, kw, cin) order).
            w4 = np.zeros((ks, ks, self.cout_pad, cin_pad), np.float32)
            w4[:, :, :out_channels, :inc] = np.transpose(np.asarray(w), (2, 3, 0, 1))
            w_full = jnp.asarray(                     # (Cout_p, ks*ks*Cin_p), (kh,kw,cin)
                w4.transpose(2, 0, 1, 3).reshape(self.cout_pad, ks * ks * cin_pad),
                self.compute_dtype)
            w_dh = jnp.asarray(                       # (ks, Cout_p, ks*Cin_p), (kw,cin)
                w4.transpose(0, 2, 1, 3).reshape(ks, self.cout_pad, ks * cin_pad),
                self.compute_dtype)
            b_col = np.zeros((self.cout_pad, 1), np.float32)
            b_col[:out_channels, 0] = np.asarray(b)

            self._layers.append(dict(ks=ks, pad=pad, cin_pad=cin_pad, relu=relu,
                                     w_full=w_full, w_dh=w_dh,
                                     b=jnp.asarray(b_col)))

    def __call__(self, x_nchw):
        N, Cin, H, W = x_nchw.shape
        S = H * W
        itemsize = self.compute_dtype.itemsize
        cfgs, weights, biases = [], [], []
        for L in self._layers:
            ks, cin_pad = L["ks"], L["cin_pad"]
            rhs_bytes = ks * ks * cin_pad * S * itemsize
            if ks == 1 or rhs_bytes <= _FULL_CONCAT_RHS_MAX_BYTES:
                mode, w = "full", L["w_full"]
            else:
                mode, w = "dh", L["w_dh"]
            cfgs.append((ks, L["pad"], cin_pad, self.cout_pad, L["relu"], mode))
            weights.append(w)
            biases.append(L["b"])
        return shortcut_conv2d_pallas(x_nchw, tuple(cfgs), weights, biases,
                                      self.out_channels)


def _reference_forward(x_nchw, model):
    """Pure-JAX reference (lax.conv, NCHW/OIHW, f32) for correctness checking."""
    x = x_nchw
    for w, b, pad, relu in zip(model.weights_oihw, model.biases,
                               model.paddings, model.relus):
        x = jax.lax.conv_general_dilated(
            x, w, window_strides=(1, 1),
            padding=[(pad, pad), (pad, pad)],
            dimension_numbers=("NCHW", "OIHW", "NCHW"),
            precision=jax.lax.Precision.HIGHEST)
        x = x + b.reshape(1, -1, 1, 1)
        if relu:
            x = jnp.maximum(x, 0.0)
    return x


if __name__ == "__main__":
    key = jax.random.PRNGKey(0)
    kx, kp, kx2, kp2 = jax.random.split(key, 4)

    # --- Config 1: small ttf_head-style shortcut (prescribed shapes).
    # Exercises the Cin zero-pad + interleaved-zero-weight-column path and the
    # single K = ks^2*Cin_pad contraction.
    N, Cin, Cout, H, W = 2, 4, 8, 16, 16
    x = jax.random.normal(kx, (N, Cin, H, W), jnp.float32)     # NCHW like PyTorch

    # f32 compute path: tight tolerance against the lax.conv reference.
    m32 = ShortcutConv2d(Cin, Cout, kernel_sizes=[3, 3], paddings=[1, 1],
                         activation_last=False, key=kp, compute_dtype=jnp.float32)
    y32 = jax.block_until_ready(m32(x))
    ref32 = jax.block_until_ready(_reference_forward(x, m32))
    np.testing.assert_allclose(np.asarray(y32), np.asarray(ref32),
                               rtol=1e-5, atol=1e-5)
    assert y32.shape == (N, Cout, H, W)

    # bf16 operand path (MXU-native, f32 accumulation): loose tolerance.
    mbf = ShortcutConv2d(Cin, Cout, kernel_sizes=[3, 3], paddings=[1, 1],
                         activation_last=False, key=kp, compute_dtype=jnp.bfloat16)
    ybf = jax.block_until_ready(mbf(x))
    refbf = jax.block_until_ready(_reference_forward(x, mbf))
    np.testing.assert_allclose(np.asarray(ybf), np.asarray(refbf),
                               rtol=3e-2, atol=3e-2)
    assert ybf.shape == (N, Cout, H, W)

    # --- Config 2: larger channels / map, exercises the per-kernel-row
    # (K = ks*Cin_pad) accumulation path that bounds the im2col VMEM footprint.
    N2, C2, H2, W2 = 1, 64, 48, 48
    x2 = jax.random.normal(kx2, (N2, C2, H2, W2), jnp.float32)
    m2 = ShortcutConv2d(C2, C2, kernel_sizes=[3, 3], paddings=[1, 1],
                        activation_last=True, key=kp2, compute_dtype=jnp.float32)
    y2 = jax.block_until_ready(m2(x2))
    ref2 = jax.block_until_ready(_reference_forward(x2, m2))
    np.testing.assert_allclose(np.asarray(y2), np.asarray(ref2),
                               rtol=1e-3, atol=1e-3)
    assert y2.shape == (N2, C2, H2, W2)

    print("KERNEL_OK")
</pallas_src>

<mosaic_0001>
module attributes {stable_mosaic.version = 11 : i64} {
  func.func @_fused_shortcut_kernel(%arg0: i32, %arg1: memref<1x8x256xf32, #tpu.memory_space<vmem>>, %arg2: memref<8x72xf32, #tpu.memory_space<vmem>>, %arg3: memref<8x1xf32, #tpu.memory_space<vmem>>, %arg4: memref<8x72xf32, #tpu.memory_space<vmem>>, %arg5: memref<8x1xf32, #tpu.memory_space<vmem>>, %arg6: memref<1x8x256xf32, #tpu.memory_space<vmem>>) attributes {dimension_semantics = [#tpu.dimension_semantics<parallel>], iteration_bounds = array<i64: 2>, scalar_prefetch = 0 : i64, scratch_operands = 0 : i64, tpu.core_type = #tpu.core_type<tc>, window_params = [{transform_indices = @transform_0, window_bounds = array<i64: 1, 8, 256>}, {pipeline_mode = #tpu.pipeline_mode<synchronous>, transform_indices = @transform_1, window_bounds = array<i64: 8, 72>}, {pipeline_mode = #tpu.pipeline_mode<synchronous>, transform_indices = @transform_2, window_bounds = array<i64: 8, 1>}, {pipeline_mode = #tpu.pipeline_mode<synchronous>, transform_indices = @transform_3, window_bounds = array<i64: 8, 72>}, {pipeline_mode = #tpu.pipeline_mode<synchronous>, transform_indices = @transform_4, window_bounds = array<i64: 8, 1>}, {transform_indices = @transform_5, window_bounds = array<i64: 1, 8, 256>}]} {
    %c0 = arith.constant 0 : index
    %c0_0 = arith.constant 0 : index
    %c0_1 = arith.constant 0 : index
    %0 = vector.load %arg1[%c0, %c0_0, %c0_1] : memref<1x8x256xf32, #tpu.memory_space<vmem>>, vector<1x8x256xf32>
    %1 = vector.shape_cast %0 : vector<1x8x256xf32> to vector<8x256xf32>
    %c0_2 = arith.constant 0 : index
    %c0_3 = arith.constant 0 : index
    %2 = vector.load %arg3[%c0_2, %c0_3] : memref<8x1xf32, #tpu.memory_space<vmem>>, vector<8x1xf32>
    %cst = arith.constant 0.000000e+00 : f32
    %3 = vector.broadcast %cst : f32 to vector<8x128xf32>
    %4 = tpu.concatenate %3, %1, %3 in 1 : vector<8x128xf32>, vector<8x256xf32>, vector<8x128xf32> -> vector<8x512xf32>
    %5 = tpu.iota {dimensions = array<i32: 1>} : vector<1x512xi32>
    %c0_i32 = arith.constant 0 : i32
    %6 = vector.broadcast %c0_i32 : i32 to vector<1x512xi32>
    %7 = arith.addi %5, %6 : vector<1x512xi32>
    %c16_i32 = arith.constant 16 : i32
    %c0_i32_4 = arith.constant 0 : i32
    %8 = arith.cmpi eq, %c16_i32, %c0_i32_4 : i32
    %c1_i32 = arith.constant 1 : i32
    %9 = arith.select %8, %c1_i32, %c16_i32 : i32
    %10 = vector.broadcast %9 : i32 to vector<1x512xi32>
    %11 = arith.remsi %7, %10 : vector<1x512xi32>
    %c0_i32_5 = arith.constant 0 : i32
    %12 = vector.broadcast %c0_i32_5 : i32 to vector<1x512xi32>
    %13 = arith.cmpi ne, %11, %12 : vector<1x512xi32>
    %c0_i32_6 = arith.constant 0 : i32
    %14 = vector.broadcast %c0_i32_6 : i32 to vector<1x512xi32>
    %15 = arith.cmpi slt, %11, %14 : vector<1x512xi32>
    %c0_i32_7 = arith.constant 0 : i32
    %16 = arith.cmpi slt, %9, %c0_i32_7 : i32
    %17 = vector.broadcast %16 : i1 to vector<1x512xi1>
    %18 = vector.broadcast %17 : vector<1x512xi1> to vector<1x512xi1>
    %19 = arith.xori %15, %18 : vector<1x512xi1>
    %20 = arith.andi %19, %13 : vector<1x512xi1>
    %21 = vector.broadcast %9 : i32 to vector<1x512xi32>
    %22 = arith.addi %11, %21 : vector<1x512xi32>
    %23 = arith.select %20, %22, %11 : vector<1x512xi1>, vector<1x512xi32>
    %c15_i32 = arith.constant 15 : i32
    %24 = vector.broadcast %c15_i32 : i32 to vector<1x512xi32>
    %25 = arith.cmpi slt, %23, %24 : vector<1x512xi32>
    %26 = arith.extui %25 : vector<1x512xi1> to vector<1x512xi32>
    %27 = arith.sitofp %26 : vector<1x512xi32> to vector<1x512xf32>
    %28 = vector.broadcast %27 : vector<1x512xf32> to vector<8x512xf32>
    %29 = arith.mulf %4, %28 : vector<8x512xf32>
    %30 = tpu.iota {dimensions = array<i32: 1>} : vector<1x512xi32>
    %c0_i32_8 = arith.constant 0 : i32
    %31 = vector.broadcast %c0_i32_8 : i32 to vector<1x512xi32>
    %32 = arith.addi %30, %31 : vector<1x512xi32>
    %c16_i32_9 = arith.constant 16 : i32
    %c0_i32_10 = arith.constant 0 : i32
    %33 = arith.cmpi eq, %c16_i32_9, %c0_i32_10 : i32
    %c1_i32_11 = arith.constant 1 : i32
    %34 = arith.select %33, %c1_i32_11, %c16_i32_9 : i32
    %35 = vector.broadcast %34 : i32 to vector<1x512xi32>
    %36 = arith.remsi %32, %35 : vector<1x512xi32>
    %c0_i32_12 = arith.constant 0 : i32
    %37 = vector.broadcast %c0_i32_12 : i32 to vector<1x512xi32>
    %38 = arith.cmpi ne, %36, %37 : vector<1x512xi32>
    %c0_i32_13 = arith.constant 0 : i32
    %39 = vector.broadcast %c0_i32_13 : i32 to vector<1x512xi32>
    %40 = arith.cmpi slt, %36, %39 : vector<1x512xi32>
    %c0_i32_14 = arith.constant 0 : i32
    %41 = arith.cmpi slt, %34, %c0_i32_14 : i32
    %42 = vector.broadcast %41 : i1 to vector<1x512xi1>
    %43 = vector.broadcast %42 : vector<1x512xi1> to vector<1x512xi1>
    %44 = arith.xori %40, %43 : vector<1x512xi1>
    %45 = arith.andi %44, %38 : vector<1x512xi1>
    %46 = vector.broadcast %34 : i32 to vector<1x512xi32>
    %47 = arith.addi %36, %46 : vector<1x512xi32>
    %48 = arith.select %45, %47, %36 : vector<1x512xi1>, vector<1x512xi32>
    %c1_i32_15 = arith.constant 1 : i32
    %49 = vector.broadcast %c1_i32_15 : i32 to vector<1x512xi32>
    %50 = arith.cmpi sge, %48, %49 : vector<1x512xi32>
    %51 = arith.extui %50 : vector<1x512xi1> to vector<1x512xi32>
    %52 = arith.sitofp %51 : vector<1x512xi32> to vector<1x512xf32>
    %53 = vector.broadcast %52 : vector<1x512xf32> to vector<8x512xf32>
    %54 = arith.mulf %4, %53 : vector<8x512xf32>
    %55 = vector.extract_strided_slice %29 {offsets = [0, 111], sizes = [8, 256], strides = [1, 1]} : vector<8x512xf32> to vector<8x256xf32>
    %56 = vector.extract_strided_slice %4 {offsets = [0, 112], sizes = [8, 256], strides = [1, 1]} : vector<8x512xf32> to vector<8x256xf32>
    %57 = vector.extract_strided_slice %54 {offsets = [0, 113], sizes = [8, 256], strides = [1, 1]} : vector<8x512xf32> to vector<8x256xf32>
    %58 = tpu.concatenate %55, %56, %57 in 0 : vector<8x256xf32>, vector<8x256xf32>, vector<8x256xf32> -> vector<24x256xf32>
    %59 = vector.extract_strided_slice %29 {offsets = [0, 127], sizes = [8, 256], strides = [1, 1]} : vector<8x512xf32> to vector<8x256xf32>
    %60 = vector.extract_strided_slice %4 {offsets = [0, 128], sizes = [8, 256], strides = [1, 1]} : vector<8x512xf32> to vector<8x256xf32>
    %61 = vector.extract_strided_slice %54 {offsets = [0, 129], sizes = [8, 256], strides = [1, 1]} : vector<8x512xf32> to vector<8x256xf32>
    %62 = tpu.concatenate %59, %60, %61 in 0 : vector<8x256xf32>, vector<8x256xf32>, vector<8x256xf32> -> vector<24x256xf32>
    %63 = vector.extract_strided_slice %29 {offsets = [0, 143], sizes = [8, 256], strides = [1, 1]} : vector<8x512xf32> to vector<8x256xf32>
    %64 = vector.extract_strided_slice %4 {offsets = [0, 144], sizes = [8, 256], strides = [1, 1]} : vector<8x512xf32> to vector<8x256xf32>
    %65 = vector.extract_strided_slice %54 {offsets = [0, 145], sizes = [8, 256], strides = [1, 1]} : vector<8x512xf32> to vector<8x256xf32>
    %66 = tpu.concatenate %63, %64, %65 in 0 : vector<8x256xf32>, vector<8x256xf32>, vector<8x256xf32> -> vector<24x256xf32>
    %67 = tpu.concatenate %58, %62, %66 in 0 : vector<24x256xf32>, vector<24x256xf32>, vector<24x256xf32> -> vector<72x256xf32>
    %c0_16 = arith.constant 0 : index
    %c0_17 = arith.constant 0 : index
    %68 = vector.load %arg2[%c0_16, %c0_17] : memref<8x72xf32, #tpu.memory_space<vmem>>, vector<8x72xf32>
    %cst_18 = arith.constant dense<0.000000e+00> : vector<8x256xf32>
    %69 = tpu.matmul %68, %67, %cst_18 {dimension_numbers = #tpu.dot_dimension_numbers<[1], [0], [0], [1], [0, 0, 1, 1], [], []>} : vector<8x72xf32>, vector<72x256xf32>, vector<8x256xf32> -> vector<8x256xf32>
    %70 = vector.broadcast %2 : vector<8x1xf32> to vector<8x256xf32>
    %71 = arith.addf %69, %70 : vector<8x256xf32>
    %cst_19 = arith.constant 0.000000e+00 : f32
    %72 = vector.broadcast %cst_19 : f32 to vector<8x256xf32>
    %73 = arith.maximumf %71, %72 : vector<8x256xf32>
    %c0_20 = arith.constant 0 : index
    %c0_21 = arith.constant 0 : index
    %74 = vector.load %arg5[%c0_20, %c0_21] : memref<8x1xf32, #tpu.memory_space<vmem>>, vector<8x1xf32>
    %cst_22 = arith.constant 0.000000e+00 : f32
    %75 = vector.broadcast %cst_22 : f32 to vector<8x128xf32>
    %76 = tpu.concatenate %75, %73, %75 in 1 : vector<8x128xf32>, vector<8x256xf32>, vector<8x128xf32> -> vector<8x512xf32>
    %77 = vector.broadcast %27 : vector<1x512xf32> to vector<8x512xf32>
    %78 = arith.mulf %76, %77 : vector<8x512xf32>
    %79 = vector.broadcast %52 : vector<1x512xf32> to vector<8x512xf32>
    %80 = arith.mulf %76, %79 : vector<8x512xf32>
    %81 = vector.extract_strided_slice %78 {offsets = [0, 111], sizes = [8, 256], strides = [1, 1]} : vector<8x512xf32> to vector<8x256xf32>
    %82 = vector.extract_strided_slice %76 {offsets = [0, 112], sizes = [8, 256], strides = [1, 1]} : vector<8x512xf32> to vector<8x256xf32>
    %83 = vector.extract_strided_slice %80 {offsets = [0, 113], sizes = [8, 256], strides = [1, 1]} : vector<8x512xf32> to vector<8x256xf32>
    %84 = tpu.concatenate %81, %82, %83 in 0 : vector<8x256xf32>, vector<8x256xf32>, vector<8x256xf32> -> vector<24x256xf32>
    %85 = vector.extract_strided_slice %78 {offsets = [0, 127], sizes = [8, 256], strides = [1, 1]} : vector<8x512xf32> to vector<8x256xf32>
    %86 = vector.extract_strided_slice %76 {offsets = [0, 128], sizes = [8, 256], strides = [1, 1]} : vector<8x512xf32> to vector<8x256xf32>
    %87 = vector.extract_strided_slice %80 {offsets = [0, 129], sizes = [8, 256], strides = [1, 1]} : vector<8x512xf32> to vector<8x256xf32>
    %88 = tpu.concatenate %85, %86, %87 in 0 : vector<8x256xf32>, vector<8x256xf32>, vector<8x256xf32> -> vector<24x256xf32>
    %89 = vector.extract_strided_slice %78 {offsets = [0, 143], sizes = [8, 256], strides = [1, 1]} : vector<8x512xf32> to vector<8x256xf32>
    %90 = vector.extract_strided_slice %76 {offsets = [0, 144], sizes = [8, 256], strides = [1, 1]} : vector<8x512xf32> to vector<8x256xf32>
    %91 = vector.extract_strided_slice %80 {offsets = [0, 145], sizes = [8, 256], strides = [1, 1]} : vector<8x512xf32> to vector<8x256xf32>
    %92 = tpu.concatenate %89, %90, %91 in 0 : vector<8x256xf32>, vector<8x256xf32>, vector<8x256xf32> -> vector<24x256xf32>
    %93 = tpu.concatenate %84, %88, %92 in 0 : vector<24x256xf32>, vector<24x256xf32>, vector<24x256xf32> -> vector<72x256xf32>
    %c0_23 = arith.constant 0 : index
    %c0_24 = arith.constant 0 : index
    %94 = vector.load %arg4[%c0_23, %c0_24] : memref<8x72xf32, #tpu.memory_space<vmem>>, vector<8x72xf32>
    %cst_25 = arith.constant dense<0.000000e+00> : vector<8x256xf32>
    %95 = tpu.matmul %94, %93, %cst_25 {dimension_numbers = #tpu.dot_dimension_numbers<[1], [0], [0], [1], [0, 0, 1, 1], [], []>} : vector<8x72xf32>, vector<72x256xf32>, vector<8x256xf32> -> vector<8x256xf32>
    %96 = vector.broadcast %74 : vector<8x1xf32> to vector<8x256xf32>
    %97 = arith.addf %95, %96 : vector<8x256xf32>
    %c0_26 = arith.constant 0 : index
    %c0_27 = arith.constant 0 : index
    %c0_28 = arith.constant 0 : index
    %98 = vector.load %arg6[%c0_26, %c0_27, %c0_28] : memref<1x8x256xf32, #tpu.memory_space<vmem>>, vector<1x8x256xf32>
    %99 = vector.shape_cast %98 : vector<1x8x256xf32> to vector<8x256xf32>
    %100 = vector.shape_cast %97 : vector<8x256xf32> to vector<1x8x256xf32>
    tpu.vector_store %arg6[%c0_26, %c0_27, %c0_28], %100 {strides = array<i32>} : memref<1x8x256xf32, #tpu.memory_space<vmem>>, vector<1x8x256xf32>,
    return
  }
  func.func @transform_0(%arg0: i32) -> (i32, i32, i32) {
    %c0_i32 = arith.constant 0 : i32
    %c0_i32_0 = arith.constant 0 : i32
    %c0_i32_1 = arith.constant 0 : i32
    return %arg0, %c0_i32, %c0_i32_0 : i32, i32, i32
  }
  func.func @transform_1(%arg0: i32) -> (i32, i32) {
    %c0_i32 = arith.constant 0 : i32
    %c0_i32_0 = arith.constant 0 : i32
    %c0_i32_1 = arith.constant 0 : i32
    return %c0_i32, %c0_i32_0 : i32, i32
  }
  func.func @transform_2(%arg0: i32) -> (i32, i32) {
    %c0_i32 = arith.constant 0 : i32
    %c0_i32_0 = arith.constant 0 : i32
    %c0_i32_1 = arith.constant 0 : i32
    return %c0_i32, %c0_i32_0 : i32, i32
  }
  func.func @transform_3(%arg0: i32) -> (i32, i32) {
    %c0_i32 = arith.constant 0 : i32
    %c0_i32_0 = arith.constant 0 : i32
    %c0_i32_1 = arith.constant 0 : i32
    return %c0_i32, %c0_i32_0 : i32, i32
  }
  func.func @transform_4(%arg0: i32) -> (i32, i32) {
    %c0_i32 = arith.constant 0 : i32
    %c0_i32_0 = arith.constant 0 : i32
    %c0_i32_1 = arith.constant 0 : i32
    return %c0_i32, %c0_i32_0 : i32, i32
  }
  func.func @transform_5(%arg0: i32) -> (i32, i32, i32) {
    %c0_i32 = arith.constant 0 : i32
    %c0_i32_0 = arith.constant 0 : i32
    %c0_i32_1 = arith.constant 0 : i32
    return %arg0, %c0_i32, %c0_i32_0 : i32, i32, i32
  }
}

</mosaic_0001>

<llo_original>
// kernel: tpu_custom_call.1
$region0: #{tpu_custom_call.1}
  #allocation0 [shape = 'u32[]', space=smem, size = 0x4, offset = 0x4, fixed_abs, tag = 'smem constant byte address 0x4 - core index']
  #allocation1 [shape = 'u32[144,128]{1,0:T(1,128)}', space=vmem, size = 0x12000, scoped, tag = 'internal scratch']
  %s0 = inlined_call_operand.hbm [shape: f32[2,8,256], index: 0, kind: input, shape index: {}]
  %s1 = inlined_call_operand.vmem [shape: f32[8,72], index: 1, kind: input, shape index: {}]
  %s2 = inlined_call_operand.vmem [shape: f32[8,1], index: 2, kind: input, shape index: {}]
  %s3 = inlined_call_operand.vmem [shape: f32[8,72], index: 3, kind: input, shape index: {}]
  %s4 = inlined_call_operand.vmem [shape: f32[8,1], index: 4, kind: input, shape index: {}]
  %s5 = inlined_call_operand.hbm [shape: f32[2,8,256], index: 5, kind: output, shape index: {}]
  %s6 = sld [smem:[#allocation0]]
  $region57: #{tpu_custom_call.1} parent=0
    _
  %s8 = ssub.s32 1, %s6
  %s9 = scalar_select 0, %s8, %s6
  $region1: #{tpu_custom_call.1} parent=0
    #allocation2 [shape = 'u8[16384]{0}', space=vmem, size = 0x4000, scoped, tag = 'input window, operand 0']
    #allocation3 [shape = 's32[2]{0}', space=sflag, size = 0x8, scoped, tag = 'scoped memory for tpu_custom_call.1']
    #allocation4 [shape = 's32[2]{0}', space=sflag, size = 0x8, scoped, tag = 'scoped memory for tpu_custom_call.1']
    #allocation5 [shape = 'u8[16384]{0}', space=vmem, size = 0x4000, scoped, tag = 'output window, operand 0']
    %10 = vsyncpa [#allocation3], 0
    %s11 = scalar_lea.sflag [#allocation3], 1
    %12 = vsyncpa %s11, 0
    %13 = vsyncpa [#allocation4], 0
    %s14 = scalar_lea.sflag [#allocation4], 1
    %15 = vsyncpa %s14, 0
    loop: start=0, step=1, limit=4
    $region2: #{tpu_custom_call.1} parent=1 // loop_pre_header
      _
    $region3: #{tpu_custom_call.1} parent=1 // loop_header
      %s17 = sphi 0, %s21
      %p18 = scmp.ge.s32.totalorder %s17, 4
      %s27 = sphi 0, %s29
      %s30 = sphi 0, %s27
      %s31 = sphi 0, %s30
      %s47 = sphi 0, %s31
      %s51 = sphi 0, %s51
      %s53 = sphi 0, %s51
      %s54 = sphi 0, %s53
      %s68 = sphi 0, %s54
      %s72 = sphi 0, %s72
      %s74 = sphi 0, %s72
      %s75 = sphi 0, %s74
      %s89 = sphi 0, %s75
      %s93 = sphi 0, %s93
      %s95 = sphi 0, %s93
      %s96 = sphi 0, %s95
      %s110 = sphi 0, %s96
      %s114 = sphi 0, %s114
      %s116 = sphi 0, %s114
      %s117 = sphi 0, %s116
      %s131 = sphi 0, %s117
      %s137 = sphi 0, %s139
      %s140 = sphi 0, %s137
      %s141 = sphi 0, %s140
      %s157 = sphi 0, %s141
    $region4: #{tpu_custom_call.1} parent=1 // loop_header_branch
      %20 = sbr.rel (%p18) target = $region8
    $region5: #{tpu_custom_call.1} parent=1 // loop_body
      %s22 = ssub.s32 %s17, 1
      %s23 = ssub.s32 %s17, 2
      %s24 = sadd.s32 %s17, 1
      %s25 = ssub.s32 %s17, %s24
      %p26 = scmp.eq.s32.totalorder %s25, 0
      %s28 = sadd.s32 %s27, 1
      %s29 = scalar_select %p26, %s27, %s28
      %p32 = pneg %p26
      %p33 = scmp.eq.s32.totalorder %s17, 1
      %p34 = por %p32, %p33
      %p35 = scmp.ne.s32.totalorder %s27, %s30
      %p36 = scmp.eq.s32.totalorder %s17, 0
      %p37 = por %p35, %p36
      %p38 = scmp.ne.s32.totalorder %s27, %s30
      %p39 = scmp.eq.s32.totalorder %s22, 1
      %p40 = por %p38, %p39
      %p41 = scmp.ne.s32.totalorder %s30, %s31
      %p42 = scmp.eq.s32.totalorder %s22, 0
      %p43 = por %p41, %p42
      %p44 = scmp.ne.s32.totalorder %s30, %s31
      %p45 = scmp.eq.s32.totalorder %s23, 1
      %p46 = por %p44, %p45
      %p48 = scmp.ne.s32.totalorder %s31, %s47
      %p49 = scmp.eq.s32.totalorder %s23, 0
      %p50 = por %p48, %p49
      %s52 = sadd.s32 %s51, 1
      %p55 = scmp.eq.s32.totalorder %s17, 1
      %p56 = scmp.ne.s32.totalorder %s51, %s53
      %p57 = scmp.eq.s32.totalorder %s17, 0
      %p58 = por %p56, %p57
      %p59 = scmp.ne.s32.totalorder %s51, %s53
      %p60 = scmp.eq.s32.totalorder %s22, 1
      %p61 = por %p59, %p60
      %p62 = scmp.ne.s32.totalorder %s53, %s54
      %p63 = scmp.eq.s32.totalorder %s22, 0
      %p64 = por %p62, %p63
      %p65 = scmp.ne.s32.totalorder %s53, %s54
      %p66 = scmp.eq.s32.totalorder %s23, 1
      %p67 = por %p65, %p66
      %p69 = scmp.ne.s32.totalorder %s54, %s68
      %p70 = scmp.eq.s32.totalorder %s23, 0
      %p71 = por %p69, %p70
      %s73 = sadd.s32 %s72, 1
      %p76 = scmp.eq.s32.totalorder %s17, 1
      %p77 = scmp.ne.s32.totalorder %s72, %s74
      %p78 = scmp.eq.s32.totalorder %s17, 0
      %p79 = por %p77, %p78
      %p80 = scmp.ne.s32.totalorder %s72, %s74
      %p81 = scmp.eq.s32.totalorder %s22, 1
      %p82 = por %p80, %p81
      %p83 = scmp.ne.s32.totalorder %s74, %s75
      %p84 = scmp.eq.s32.totalorder %s22, 0
      %p85 = por %p83, %p84
      %p86 = scmp.ne.s32.totalorder %s74, %s75
      %p87 = scmp.eq.s32.totalorder %s23, 1
      %p88 = por %p86, %p87
      %p90 = scmp.ne.s32.totalorder %s75, %s89
      %p91 = scmp.eq.s32.totalorder %s23, 0
      %p92 = por %p90, %p91
      %s94 = sadd.s32 %s93, 1
      %p97 = scmp.eq.s32.totalorder %s17, 1
      %p98 = scmp.ne.s32.totalorder %s93, %s95
      %p99 = scmp.eq.s32.totalorder %s17, 0
      %p100 = por %p98, %p99
      %p101 = scmp.ne.s32.totalorder %s93, %s95
      %p102 = scmp.eq.s32.totalorder %s22, 1
      %p103 = por %p101, %p102
      %p104 = scmp.ne.s32.totalorder %s95, %s96
      %p105 = scmp.eq.s32.totalorder %s22, 0
      %p106 = por %p104, %p105
      %p107 = scmp.ne.s32.totalorder %s95, %s96
      %p108 = scmp.eq.s32.totalorder %s23, 1
      %p109 = por %p107, %p108
      %p111 = scmp.ne.s32.totalorder %s96, %s110
      %p112 = scmp.eq.s32.totalorder %s23, 0
      %p113 = por %p111, %p112
      %s115 = sadd.s32 %s114, 1
      %p118 = scmp.eq.s32.totalorder %s17, 1
      %p119 = scmp.ne.s32.totalorder %s114, %s116
      %p120 = scmp.eq.s32.totalorder %s17, 0
      %p121 = por %p119, %p120
      %p122 = scmp.ne.s32.totalorder %s114, %s116
      %p123 = scmp.eq.s32.totalorder %s22, 1
      %p124 = por %p122, %p123
      %p125 = scmp.ne.s32.totalorder %s116, %s117
      %p126 = scmp.eq.s32.totalorder %s22, 0
      %p127 = por %p125, %p126
      %p128 = scmp.ne.s32.totalorder %s116, %s117
      %p129 = scmp.eq.s32.totalorder %s23, 1
      %p130 = por %p128, %p129
      %p132 = scmp.ne.s32.totalorder %s117, %s131
      %p133 = scmp.eq.s32.totalorder %s23, 0
      %p134 = por %p132, %p133
      %s135 = ssub.s32 %s17, %s24
      %p136 = scmp.eq.s32.totalorder %s135, 0
      %s138 = sadd.s32 %s137, 1
      %s139 = scalar_select %p136, %s137, %s138
      %p142 = pneg %p136
      %p143 = scmp.eq.s32.totalorder %s17, 1
      %p144 = por %p142, %p143
      %p145 = scmp.ne.s32.totalorder %s137, %s140
      %p146 = scmp.eq.s32.totalorder %s17, 0
      %p147 = por %p145, %p146
      %p148 = scmp.ne.s32.totalorder %s137, %s140
      %p149 = scmp.eq.s32.totalorder %s22, 1
      %p150 = por %p148, %p149
      %p151 = scmp.ne.s32.totalorder %s140, %s141
      %p152 = scmp.eq.s32.totalorder %s22, 0
      %p153 = por %p151, %p152
      %p154 = scmp.ne.s32.totalorder %s140, %s141
      %p155 = scmp.eq.s32.totalorder %s23, 1
      %p156 = por %p154, %p155
      %p158 = scmp.ne.s32.totalorder %s141, %s157
      %p159 = scmp.eq.s32.totalorder %s23, 0
      %p160 = por %p158, %p159
      %p161 = scmp.le.s32.totalorder 1, %s17
      %p162 = scmp.lt.s32.totalorder %s17, 3
      %p163 = pnand %p161, %p162
      %p164 = pneg %p163
      // Predicated region
      $region9: #{tpu_custom_call.1} parent=5 // pred_check
        _
      $region10: #{tpu_custom_call.1} parent=5 // pred_check_branch
        %166 = sbr.rel (%p163) target = $region12
      $region11: #{tpu_custom_call.1} parent=5 // pred_region
        %s167 = ssub.s32 %s17, 1
        // Predicated region
        $region13: #{tpu_custom_call.1} parent=11 // pred_check
          %p168 = pneg %p64
        $region14: #{tpu_custom_call.1} parent=11 // pred_check_branch
          %170 = sbr.rel (%p168) target = $region16
        $region15: #{tpu_custom_call.1} parent=11 // pred_region
          _
        $region16: #{tpu_custom_call.1} parent=11 // pred_fallthru
          _
        // Predicated region
        $region17: #{tpu_custom_call.1} parent=11 // pred_check
          %p171 = pneg %p85
        $region18: #{tpu_custom_call.1} parent=11 // pred_check_branch
          %173 = sbr.rel (%p171) target = $region20
        $region19: #{tpu_custom_call.1} parent=11 // pred_region
          _
        $region20: #{tpu_custom_call.1} parent=11 // pred_fallthru
          _
        // Predicated region
        $region21: #{tpu_custom_call.1} parent=11 // pred_check
          %p174 = pneg %p106
        $region22: #{tpu_custom_call.1} parent=11 // pred_check_branch
          %176 = sbr.rel (%p174) target = $region24
        $region23: #{tpu_custom_call.1} parent=11 // pred_region
          _
        $region24: #{tpu_custom_call.1} parent=11 // pred_fallthru
          _
        // Predicated region
        $region25: #{tpu_custom_call.1} parent=11 // pred_check
          %p177 = pneg %p127
        $region26: #{tpu_custom_call.1} parent=11 // pred_check_branch
          %179 = sbr.rel (%p177) target = $region28
        $region27: #{tpu_custom_call.1} parent=11 // pred_region
          _
        $region28: #{tpu_custom_call.1} parent=11 // pred_fallthru
          _
      $region12: #{tpu_custom_call.1} parent=5 // pred_fallthru
        _
      %p180 = scmp.lt.s32.totalorder %s17, 2
      // Predicated region
      $region29: #{tpu_custom_call.1} parent=5 // pred_check
        %p181 = pneg %p180
      $region30: #{tpu_custom_call.1} parent=5 // pred_check_branch
        %183 = sbr.rel (%p181) target = $region32
      $region31: #{tpu_custom_call.1} parent=5 // pred_region
        // Predicated region
        $region33: #{tpu_custom_call.1} parent=31 // pred_check
          %p184 = pneg %p37
        $region34: #{tpu_custom_call.1} parent=31 // pred_check_branch
          %186 = sbr.rel (%p184) target = $region36
        $region35: #{tpu_custom_call.1} parent=31 // pred_region
          %s187 = sand.u32 %s27, 1
          %s188 = scalar_lea.sflag [#allocation3], %s187
          %s189 = sand.u32 %s27, 1
          %s190 = smul.addr %s189, 16
          %s191 = scalar_lea.vmem [#allocation2], %s190
          %s193 = ssub.s32 256, 256
          %194 = vsyncadd %s188, %s193
          %s195 = smul.addr %s17, 2
          %s196 = smul.addr %s195, 128
          %s197 = scalar_lea.hbm %s0, %s196
          %s199 = sshll.u32 %s191, 4
          %s200 = int_to_ptr.vmem [resolvable:$true] %s199
          %202 = dma.hbm_to_vmem [thread:$0]  %s197, 256, %s200, %s188
        $region36: #{tpu_custom_call.1} parent=31 // pred_fallthru
          _
      $region32: #{tpu_custom_call.1} parent=5 // pred_fallthru
        _
      %p203 = scmp.le.s32.totalorder 1, %s17
      %p204 = scmp.lt.s32.totalorder %s17, 3
      %p205 = pnand %p203, %p204
      %p206 = pneg %p205
      // Predicated region
      $region37: #{tpu_custom_call.1} parent=5 // pred_check
        _
      $region38: #{tpu_custom_call.1} parent=5 // pred_check_branch
        %208 = sbr.rel (%p205) target = $region40
      $region39: #{tpu_custom_call.1} parent=5 // pred_region
        %s209 = ssub.s32 %s17, 1
        %s210 = sand.u32 %s30, 1
        %s211 = scalar_lea.sflag [#allocation3], %s210
        %s212 = sand.u32 %s30, 1
        %s213 = smul.addr %s212, 16
        %s214 = scalar_lea.vmem [#allocation2], %s213
        // Predicated region
        $region41: #{tpu_custom_call.1} parent=39 // pred_check
          %p215 = pneg %p43
        $region42: #{tpu_custom_call.1} parent=39 // pred_check_branch
          %217 = sbr.rel (%p215) target = $region44
        $region43: #{tpu_custom_call.1} parent=39 // pred_region
          %218 = dma.done %s211, 256
        $region44: #{tpu_custom_call.1} parent=39 // pred_fallthru
          _
        %s219 = sand.u32 %s30, 1
        %s220 = scalar_lea.sflag [#allocation3], %s219
        %s221 = sand.u32 %s30, 1
        %s222 = smul.addr %s221, 16
        %s223 = scalar_lea.vmem [#allocation2], %s222
        %p224 = pneg %p43
        %p225 = pneg %p40
        %p226 = pneg %p64
        %p227 = pneg %p61
        %p228 = pneg %p85
        %p229 = pneg %p82
        %p230 = pneg %p106
        %p231 = pneg %p103
        %p232 = pneg %p127
        %p233 = pneg %p124
        %p234 = pneg %p153
        %p235 = pneg %p150
        %s236 = sand.u32 %s140, 1
        %s237 = scalar_lea.sflag [#allocation4], %s236
        %s238 = sand.u32 %s140, 1
        %s239 = smul.addr %s238, 16
        %s240 = scalar_lea.vmem [#allocation5], %s239
        %v241 = vld [vmem:[%s214] sm:$0xff]
        %v242 = vld [vmem:[%s214 + $0x8] sm:$0xff]
        %v243 = vld [vmem:[%s2] sm:$0xff]
        %v244 = vlaneseq
        %v245 = vand.u32 %v244, 127
        %v246 = vadd.s32 %v245, 128
        %v247 = vadd.s32 %v245, 256
        %v248 = vadd.s32 %v245, 384
        %vm249 = vcmp.lt.s32.totalorder %v245, 0
        %v250 = vsub.s32 0, %v245
        %v251 = vsel %vm249, %v250, %v245
        %v252 = vshrl.u32 %v251, 4
        %v253 = vand.u32 %v251, 15
        %v254 = vsub.s32 0, %v253
        %v255 = vsel %vm249, %v254, %v253
        %vm256 = vcmp.lt.s32.totalorder %v246, 0
        %v257 = vsub.s32 0, %v246
        %v258 = vsel %vm256, %v257, %v246
        %v259 = vshrl.u32 %v258, 4
        %v260 = vand.u32 %v258, 15
        %v261 = vsub.s32 0, %v260
        %v262 = vsel %vm256, %v261, %v260
        %vm263 = vcmp.lt.s32.totalorder %v247, 0
        %v264 = vsub.s32 0, %v247
        %v265 = vsel %vm263, %v264, %v247
        %v266 = vshrl.u32 %v265, 4
        %v267 = vand.u32 %v265, 15
        %v268 = vsub.s32 0, %v267
        %v269 = vsel %vm263, %v268, %v267
        %vm270 = vcmp.lt.s32.totalorder %v248, 0
        %v271 = vsub.s32 0, %v248
        %v272 = vsel %vm270, %v271, %v248
        %v273 = vshrl.u32 %v272, 4
        %v274 = vand.u32 %v272, 15
        %v275 = vsub.s32 0, %v274
        %v276 = vsel %vm270, %v275, %v274
        %vm277 = vcmp.ne.s32.totalorder %v255, 0
        %vm278 = vcmp.ne.s32.totalorder %v262, 0
        %vm279 = vcmp.ne.s32.totalorder %v269, 0
        %vm280 = vcmp.ne.s32.totalorder %v276, 0
        %vm281 = vcmp.lt.s32.totalorder %v255, 0
        %vm282 = vcmp.lt.s32.totalorder %v262, 0
        %vm283 = vcmp.lt.s32.totalorder %v269, 0
        %vm284 = vcmp.lt.s32.totalorder %v276, 0
        %vm285 = vmand %vm281, %vm277
        %vm286 = vmand %vm282, %vm278
        %vm287 = vmand %vm283, %vm279
        %vm288 = vmand %vm284, %vm280
        %v289 = vadd.s32 %v255, 16
        %v290 = vadd.s32 %v262, 16
        %v291 = vadd.s32 %v269, 16
        %v292 = vadd.s32 %v276, 16
        %v293 = vsel %vm285, %v289, %v255
        %v294 = vsel %vm286, %v290, %v262
        %v295 = vsel %vm287, %v291, %v269
        %v296 = vsel %vm288, %v292, %v276
        %vm297 = vcmp.lt.s32.totalorder %v293, 15
        %vm298 = vcmp.lt.s32.totalorder %v294, 15
        %vm299 = vcmp.lt.s32.totalorder %v295, 15
        %vm300 = vcmp.lt.s32.totalorder %v296, 15
        %v301 = vsel %vm297, 1, 0
        %v302 = vsel %vm298, 1, 0
        %v303 = vsel %vm299, 1, 0
        %v304 = vsel %vm300, 1, 0
        %v305 = vcvt.s32.f32 %v301
        %v306 = vcvt.s32.f32 %v302
        %v307 = vcvt.s32.f32 %v303
        %v308 = vcvt.s32.f32 %v304
        %v309 = vmul.f32 %v305, 0.0
        %v310 = vmul.f32 %v241, %v306
        %v311 = vmul.f32 %v242, %v307
        %v312 = vmul.f32 %v308, 0.0
        %vm313 = vcmp.ge.s32.totalorder %v293, 1
        %vm314 = vcmp.ge.s32.totalorder %v294, 1
        %vm315 = vcmp.ge.s32.totalorder %v295, 1
        %vm316 = vcmp.ge.s32.totalorder %v296, 1
        %v317 = vsel %vm313, 1, 0
        %v318 = vsel %vm314, 1, 0
        %v319 = vsel %vm315, 1, 0
        %v320 = vsel %vm316, 1, 0
        %v321 = vcvt.s32.f32 %v317
        %v322 = vcvt.s32.f32 %v318
        %v323 = vcvt.s32.f32 %v319
        %v324 = vcvt.s32.f32 %v320
        %v325 = vmul.f32 %v321, 0.0
        %v326 = vmul.f32 %v241, %v322
        %v327 = vmul.f32 %v242, %v323
        %v328 = vmul.f32 %v324, 0.0
        %332 = vrot.lane.b32.xlu0 0.0, 127
        %v333 = vpop.permute.xlu0 %332
        %334 = vrot.lane.b32.xlu0 %v241, 127
        %v335 = vpop.permute.xlu0 %334
        %336 = vrot.lane.b32.xlu0 %v242, 127
        %v337 = vpop.permute.xlu0 %336
        %vm338 = vcmask 1039360
        %v339 = vsel %vm338, %v333, %v335
        %v340 = vsel %vm338, %v335, %v337
        %344 = vrot.lane.b32.xlu0 %v325, 126
        %v345 = vpop.permute.xlu0 %344
        %346 = vrot.lane.b32.xlu0 %v326, 126
        %v347 = vpop.permute.xlu0 %346
        %348 = vrot.lane.b32.xlu0 %v327, 126
        %v349 = vpop.permute.xlu0 %348
        %vm350 = vcmask 1031168
        %v351 = vsel %vm350, %v345, %v347
        %v352 = vsel %vm350, %v347, %v349
        %354 = vrot.lane.b32.xlu0 %v328, 126
        %v355 = vpop.permute.xlu0 %354
        %v356 = vsel %vm350, %v349, %v355
        %v357 = vsel %vm338, %v337, %v333
        %361 = vrot.lane.b32.xlu0 %v309, 112
        %v362 = vpop.permute.xlu0 %361
        %363 = vrot.lane.b32.xlu0 %v310, 112
        %v364 = vpop.permute.xlu0 %363
        %365 = vrot.lane.b32.xlu0 %v311, 112
        %v366 = vpop.permute.xlu0 %365
        %367 = vrot.lane.b32.xlu0 %v335, 112
        %v368 = vpop.permute.xlu0 %367
        %369 = vrot.lane.b32.xlu0 %v340, 112
        %v370 = vpop.permute.xlu0 %369
        %371 = vrot.lane.b32.xlu0 %v337, 112
        %v372 = vpop.permute.xlu0 %371
        %373 = vrot.lane.b32.xlu0 %v347, 112
        %v374 = vpop.permute.xlu0 %373
        %375 = vrot.lane.b32.xlu0 %v352, 112
        %v376 = vpop.permute.xlu0 %375
        %377 = vrot.lane.b32.xlu0 %v356, 112
        %v378 = vpop.permute.xlu0 %377
        %vm379 = vcmask 916480
        %v380 = vsel %vm379, %v362, %v364
        %v381 = vsel %vm379, %v364, %v366
        %v382 = vsel %vm379, %v368, %v370
        %v383 = vsel %vm379, %v370, %v372
        %v384 = vsel %vm379, %v374, %v376
        %v385 = vsel %vm379, %v376, %v378
        %387 = vrot.lane.b32.xlu0 %v310, 96
        %v388 = vpop.permute.xlu0 %387
        %389 = vrot.lane.b32.xlu0 %v311, 96
        %v390 = vpop.permute.xlu0 %389
        %391 = vrot.lane.b32.xlu0 %v312, 96
        %v392 = vpop.permute.xlu0 %391
        %393 = vrot.lane.b32.xlu0 %v340, 96
        %v394 = vpop.permute.xlu0 %393
        %395 = vrot.lane.b32.xlu0 %v357, 96
        %v396 = vpop.permute.xlu0 %395
        %397 = vrot.lane.b32.xlu0 %v333, 96
        %v398 = vpop.permute.xlu0 %397
        %399 = vrot.lane.b32.xlu0 %v352, 96
        %v400 = vpop.permute.xlu0 %399
        %401 = vrot.lane.b32.xlu0 %v356, 96
        %v402 = vpop.permute.xlu0 %401
        %403 = vrot.lane.b32.xlu0 %v355, 96
        %v404 = vpop.permute.xlu0 %403
        %vm405 = vcmask 785408
        %v406 = vsel %vm405, %v388, %v390
        %v407 = vsel %vm405, %v390, %v392
        %v408 = vsel %vm405, %v394, %v396
        %v409 = vsel %vm405, %v396, %v398
        %v410 = vsel %vm405, %v400, %v402
        %v411 = vsel %vm405, %v402, %v404
        %v412 = vld [vmem:[%s1] sm:$0xff]
        %414 = vset.pattern.permute.xlu0 0
        %415 = vperm.xlu0 %414, %v243
        %v416 = vpop.permute.xlu0 %415
        %418 = vrot.lane.b32.xlu0 %v309, 17
        %v419 = vpop.permute.xlu0 %418
        %420 = vrot.lane.b32.xlu0 %v310, 17
        %v421 = vpop.permute.xlu0 %420
        %422 = vrot.lane.b32.xlu0 %v311, 17
        %v423 = vpop.permute.xlu0 %422
        %424 = vrot.lane.b32.xlu0 %v339, 17
        %v425 = vpop.permute.xlu0 %424
        %426 = vrot.lane.b32.xlu0 %v340, 17
        %v427 = vpop.permute.xlu0 %426
        %428 = vrot.lane.b32.xlu0 %v337, 17
        %v429 = vpop.permute.xlu0 %428
        %430 = vrot.lane.b32.xlu0 %v351, 17
        %v431 = vpop.permute.xlu0 %430
        %432 = vrot.lane.b32.xlu0 %v352, 17
        %v433 = vpop.permute.xlu0 %432
        %434 = vrot.lane.b32.xlu0 %v349, 17
        %v435 = vpop.permute.xlu0 %434
        %436 = vrot.lane.b32.xlu0 %v380, 17
        %v437 = vpop.permute.xlu0 %436
        %438 = vrot.lane.b32.xlu0 %v381, 17
        %v439 = vpop.permute.xlu0 %438
        %440 = vrot.lane.b32.xlu0 %v366, 17
        %v441 = vpop.permute.xlu0 %440
        %442 = vrot.lane.b32.xlu0 %v382, 17
        %v443 = vpop.permute.xlu0 %442
        %444 = vrot.lane.b32.xlu0 %v383, 17
        %v445 = vpop.permute.xlu0 %444
        %446 = vrot.lane.b32.xlu0 %v372, 17
        %v447 = vpop.permute.xlu0 %446
        %448 = vrot.lane.b32.xlu0 %v384, 17
        %v449 = vpop.permute.xlu0 %448
        %450 = vrot.lane.b32.xlu0 %v385, 17
        %v451 = vpop.permute.xlu0 %450
        %452 = vrot.lane.b32.xlu0 %v378, 17
        %v453 = vpop.permute.xlu0 %452
        %454 = vrot.lane.b32.xlu0 %v388, 17
        %v455 = vpop.permute.xlu0 %454
        %456 = vrot.lane.b32.xlu0 %v406, 17
        %v457 = vpop.permute.xlu0 %456
        %458 = vrot.lane.b32.xlu0 %v407, 17
        %v459 = vpop.permute.xlu0 %458
        %460 = vrot.lane.b32.xlu0 %v394, 17
        %v461 = vpop.permute.xlu0 %460
        %462 = vrot.lane.b32.xlu0 %v408, 17
        %v463 = vpop.permute.xlu0 %462
        %464 = vrot.lane.b32.xlu0 %v409, 17
        %v465 = vpop.permute.xlu0 %464
        %466 = vrot.lane.b32.xlu0 %v400, 17
        %v467 = vpop.permute.xlu0 %466
        %468 = vrot.lane.b32.xlu0 %v410, 17
        %v469 = vpop.permute.xlu0 %468
        %470 = vrot.lane.b32.xlu0 %v411, 17
        %v471 = vpop.permute.xlu0 %470
        %vm472 = vcmask 138240
        %v473 = vsel %vm472, %v419, %v421
        %v474 = vsel %vm472, %v421, %v423
        %v475 = vsel %vm472, %v425, %v427
        %v476 = vsel %vm472, %v427, %v429
        %v477 = vsel %vm472, %v431, %v433
        %v478 = vsel %vm472, %v433, %v435
        %v479 = vsel %vm472, %v437, %v439
        %v480 = vsel %vm472, %v439, %v441
        %v481 = vsel %vm472, %v443, %v445
        %v482 = vsel %vm472, %v445, %v447
        %v483 = vsel %vm472, %v449, %v451
        %v484 = vsel %vm472, %v451, %v453
        %v485 = vsel %vm472, %v455, %v457
        %v486 = vsel %vm472, %v457, %v459
        %v487 = vsel %vm472, %v461, %v463
        %v488 = vsel %vm472, %v463, %v465
        %v489 = vsel %vm472, %v467, %v469
        %v490 = vsel %vm472, %v469, %v471
        %vm509 = vcmask 588800
        %v511 = vsel %vm509, %v412, 0
        %513 = vmatprep.subr.mxu0 0.0
        %514 = vmatpush1.msra.mxu0 0.0
        %515 = vmatprep.subr.mxu0 0.0
        %516 = vmatpush1.msra.mxu0 0.0
        %517 = vmatprep.subr.mxu0 0.0
        %518 = vmatpush1.msra.mxu0 0.0
        %519 = vmatprep.subr.mxu0 0.0
        %520 = vmatpush1.msra.mxu0 0.0
        %521 = vmatprep.subr.mxu0 0.0
        %522 = vmatpush1.msra.mxu0 0.0
        %523 = vmatprep.subr.mxu0 0.0
        %524 = vmatpush1.msra.mxu0 0.0
        %525 = vmatprep.subr.mxu0 0.0
        %526 = vmatpush1.msra.mxu0 0.0
        %527 = vmatprep.subr.mxu0 %v490
        %528 = vmatpush1.msra.mxu0 %v489
        %529 = vmatprep.subr.mxu0 %v488
        %530 = vmatpush1.msra.mxu0 %v487
        %531 = vmatprep.subr.mxu0 %v486
        %532 = vmatpush1.msra.mxu0 %v485
        %533 = vmatprep.subr.mxu0 %v484
        %534 = vmatpush1.msra.mxu0 %v483
        %535 = vmatprep.subr.mxu0 %v482
        %536 = vmatpush1.msra.mxu0 %v481
        %537 = vmatprep.subr.mxu0 %v480
        %538 = vmatpush1.msra.mxu0 %v479
        %539 = vmatprep.subr.mxu0 %v478
        %540 = vmatpush1.msra.mxu0 %v477
        %541 = vmatprep.subr.mxu0 %v476
        %542 = vmatpush1.msra.mxu0 %v475
        %543 = vmatprep.subr.mxu0 %v474
        %544 = vmatpush1.msra.mxu0 %v473
        %545 = vmatprep.subr.mxu0 0.0
        %546 = vmatpush2.msra.mxu0 0.0
        %547 = vmatprep.subr.mxu0 0.0
        %548 = vmatpush2.msra.mxu0 0.0
        %549 = vmatprep.subr.mxu0 0.0
        %550 = vmatpush2.msra.mxu0 0.0
        %551 = vmatprep.subr.mxu0 0.0
        %552 = vmatpush2.msra.mxu0 0.0
        %553 = vmatprep.subr.mxu0 0.0
        %554 = vmatpush2.msra.mxu0 0.0
        %555 = vmatprep.subr.mxu0 0.0
        %556 = vmatpush2.msra.mxu0 0.0
        %557 = vmatprep.subr.mxu0 0.0
        %558 = vmatpush2.msra.mxu0 0.0
        %559 = vmatprep.subr.mxu0 0.0
        %560 = vmatpush2.msra.mxu0 0.0
        %561 = vmatprep.subr.mxu0 0.0
        %562 = vmatpush2.msra.mxu0 0.0
        %563 = vmatprep.subr.mxu0 0.0
        %564 = vmatpush2.msra.mxu0 0.0
        %565 = vmatprep.subr.mxu0 0.0
        %566 = vmatpush2.msra.mxu0 0.0
        %567 = vmatprep.subr.mxu0 0.0
        %568 = vmatpush2.msra.mxu0 0.0
        %569 = vmatprep.subr.mxu0 0.0
        %570 = vmatpush2.msra.mxu0 0.0
        %571 = vmatprep.subr.mxu0 0.0
        %572 = vmatpush2.msra.mxu0 0.0
        %573 = vmatprep.subr.mxu0 0.0
        %574 = vmatpush2.msra.mxu0 0.0
        %575 = vmatprep.subr.mxu0 0.0
        %576 = vmatpush2.msra.mxu0 0.0
        %577 = vmatprep.mubr.f32.mxu0 0.0
        %578 = vmatmul.mubr.f32.gmra.mxu0 %v511
        %v579 = vpop.f32.mrf.mxu0
        %v580 = vadd.f32 %v416, %v579
        %v581 = vpop.f32.mrf.mxu0
        %v582 = vadd.f32 %v416, %v581
        %583 = vdwg.mxu0
        %v584 = vmax.f32 %v580, 0.0
        %v585 = vmax.f32 %v582, 0.0
        %v586 = vld [vmem:[%s4] sm:$0xff]
        %v587 = vmul.f32 %v584, %v306
        %v588 = vmul.f32 %v585, %v307
        %v589 = vmul.f32 %v584, %v322
        %v590 = vmul.f32 %v585, %v323
        %593 = vrot.lane.b32.xlu0 %v584, 127
        %v594 = vpop.permute.xlu0 %593
        %595 = vrot.lane.b32.xlu0 %v585, 127
        %v596 = vpop.permute.xlu0 %595
        %v597 = vsel %vm338, %v333, %v594
        %v598 = vsel %vm338, %v594, %v596
        %601 = vrot.lane.b32.xlu0 %v589, 126
        %v602 = vpop.permute.xlu0 %601
        %603 = vrot.lane.b32.xlu0 %v590, 126
        %v604 = vpop.permute.xlu0 %603
        %v605 = vsel %vm350, %v345, %v602
        %v606 = vsel %vm350, %v602, %v604
        %v607 = vsel %vm350, %v604, %v355
        %v608 = vsel %vm338, %v596, %v333
        %611 = vrot.lane.b32.xlu0 %v587, 112
        %v612 = vpop.permute.xlu0 %611
        %613 = vrot.lane.b32.xlu0 %v588, 112
        %v614 = vpop.permute.xlu0 %613
        %615 = vrot.lane.b32.xlu0 %v594, 112
        %v616 = vpop.permute.xlu0 %615
        %617 = vrot.lane.b32.xlu0 %v598, 112
        %v618 = vpop.permute.xlu0 %617
        %619 = vrot.lane.b32.xlu0 %v596, 112
        %v620 = vpop.permute.xlu0 %619
        %621 = vrot.lane.b32.xlu0 %v602, 112
        %v622 = vpop.permute.xlu0 %621
        %623 = vrot.lane.b32.xlu0 %v606, 112
        %v624 = vpop.permute.xlu0 %623
        %625 = vrot.lane.b32.xlu0 %v607, 112
        %v626 = vpop.permute.xlu0 %625
        %v627 = vsel %vm379, %v362, %v612
        %v628 = vsel %vm379, %v612, %v614
        %v629 = vsel %vm379, %v616, %v618
        %v630 = vsel %vm379, %v618, %v620
        %v631 = vsel %vm379, %v622, %v624
        %v632 = vsel %vm379, %v624, %v626
        %633 = vrot.lane.b32.xlu0 %v587, 96
        %v634 = vpop.permute.xlu0 %633
        %635 = vrot.lane.b32.xlu0 %v588, 96
        %v636 = vpop.permute.xlu0 %635
        %637 = vrot.lane.b32.xlu0 %v598, 96
        %v638 = vpop.permute.xlu0 %637
        %639 = vrot.lane.b32.xlu0 %v608, 96
        %v640 = vpop.permute.xlu0 %639
        %641 = vrot.lane.b32.xlu0 %v606, 96
        %v642 = vpop.permute.xlu0 %641
        %643 = vrot.lane.b32.xlu0 %v607, 96
        %v644 = vpop.permute.xlu0 %643
        %v645 = vsel %vm405, %v634, %v636
        %v646 = vsel %vm405, %v636, %v392
        %v647 = vsel %vm405, %v638, %v640
        %v648 = vsel %vm405, %v640, %v398
        %v649 = vsel %vm405, %v642, %v644
        %v650 = vsel %vm405, %v644, %v404
        %v651 = vld [vmem:[%s3] sm:$0xff]
        %653 = vset.pattern.permute.xlu0 0
        %654 = vperm.xlu0 %653, %v586
        %v655 = vpop.permute.xlu0 %654
        %657 = vrot.lane.b32.xlu0 %v587, 17
        %v658 = vpop.permute.xlu0 %657
        %659 = vrot.lane.b32.xlu0 %v588, 17
        %v660 = vpop.permute.xlu0 %659
        %661 = vrot.lane.b32.xlu0 %v597, 17
        %v662 = vpop.permute.xlu0 %661
        %663 = vrot.lane.b32.xlu0 %v598, 17
        %v664 = vpop.permute.xlu0 %663
        %665 = vrot.lane.b32.xlu0 %v596, 17
        %v666 = vpop.permute.xlu0 %665
        %667 = vrot.lane.b32.xlu0 %v605, 17
        %v668 = vpop.permute.xlu0 %667
        %669 = vrot.lane.b32.xlu0 %v606, 17
        %v670 = vpop.permute.xlu0 %669
        %671 = vrot.lane.b32.xlu0 %v604, 17
        %v672 = vpop.permute.xlu0 %671
        %673 = vrot.lane.b32.xlu0 %v627, 17
        %v674 = vpop.permute.xlu0 %673
        %675 = vrot.lane.b32.xlu0 %v628, 17
        %v676 = vpop.permute.xlu0 %675
        %677 = vrot.lane.b32.xlu0 %v614, 17
        %v678 = vpop.permute.xlu0 %677
        %679 = vrot.lane.b32.xlu0 %v629, 17
        %v680 = vpop.permute.xlu0 %679
        %681 = vrot.lane.b32.xlu0 %v630, 17
        %v682 = vpop.permute.xlu0 %681
        %683 = vrot.lane.b32.xlu0 %v620, 17
        %v684 = vpop.permute.xlu0 %683
        %685 = vrot.lane.b32.xlu0 %v631, 17
        %v686 = vpop.permute.xlu0 %685
        %687 = vrot.lane.b32.xlu0 %v632, 17
        %v688 = vpop.permute.xlu0 %687
        %689 = vrot.lane.b32.xlu0 %v626, 17
        %v690 = vpop.permute.xlu0 %689
        %691 = vrot.lane.b32.xlu0 %v634, 17
        %v692 = vpop.permute.xlu0 %691
        %693 = vrot.lane.b32.xlu0 %v645, 17
        %v694 = vpop.permute.xlu0 %693
        %695 = vrot.lane.b32.xlu0 %v646, 17
        %v696 = vpop.permute.xlu0 %695
        %697 = vrot.lane.b32.xlu0 %v638, 17
        %v698 = vpop.permute.xlu0 %697
        %699 = vrot.lane.b32.xlu0 %v647, 17
        %v700 = vpop.permute.xlu0 %699
        %701 = vrot.lane.b32.xlu0 %v648, 17
        %v702 = vpop.permute.xlu0 %701
        %703 = vrot.lane.b32.xlu0 %v642, 17
        %v704 = vpop.permute.xlu0 %703
        %705 = vrot.lane.b32.xlu0 %v649, 17
        %v706 = vpop.permute.xlu0 %705
        %707 = vrot.lane.b32.xlu0 %v650, 17
        %v708 = vpop.permute.xlu0 %707
        %v709 = vsel %vm472, %v419, %v658
        %v710 = vsel %vm472, %v658, %v660
        %v711 = vsel %vm472, %v662, %v664
        %v712 = vsel %vm472, %v664, %v666
        %v713 = vsel %vm472, %v668, %v670
        %v714 = vsel %vm472, %v670, %v672
        %v715 = vsel %vm472, %v674, %v676
        %v716 = vsel %vm472, %v676, %v678
        %v717 = vsel %vm472, %v680, %v682
        %v718 = vsel %vm472, %v682, %v684
        %v719 = vsel %vm472, %v686, %v688
        %v720 = vsel %vm472, %v688, %v690
        %v721 = vsel %vm472, %v692, %v694
        %v722 = vsel %vm472, %v694, %v696
        %v723 = vsel %vm472, %v698, %v700
        %v724 = vsel %vm472, %v700, %v702
        %v725 = vsel %vm472, %v704, %v706
        %v726 = vsel %vm472, %v706, %v708
        %v746 = vsel %vm509, %v651, 0
        %748 = vmatprep.subr.mxu0 0.0
        %749 = vmatpush1.msra.mxu0 0.0
        %750 = vmatprep.subr.mxu0 0.0
        %751 = vmatpush1.msra.mxu0 0.0
        %752 = vmatprep.subr.mxu0 0.0
        %753 = vmatpush1.msra.mxu0 0.0
        %754 = vmatprep.subr.mxu0 0.0
        %755 = vmatpush1.msra.mxu0 0.0
        %756 = vmatprep.subr.mxu0 0.0
        %757 = vmatpush1.msra.mxu0 0.0
        %758 = vmatprep.subr.mxu0 0.0
        %759 = vmatpush1.msra.mxu0 0.0
        %760 = vmatprep.subr.mxu0 0.0
        %761 = vmatpush1.msra.mxu0 0.0
        %762 = vmatprep.subr.mxu0 %v726
        %763 = vmatpush1.msra.mxu0 %v725
        %764 = vmatprep.subr.mxu0 %v724
        %765 = vmatpush1.msra.mxu0 %v723
        %766 = vmatprep.subr.mxu0 %v722
        %767 = vmatpush1.msra.mxu0 %v721
        %768 = vmatprep.subr.mxu0 %v720
        %769 = vmatpush1.msra.mxu0 %v719
        %770 = vmatprep.subr.mxu0 %v718
        %771 = vmatpush1.msra.mxu0 %v717
        %772 = vmatprep.subr.mxu0 %v716
        %773 = vmatpush1.msra.mxu0 %v715
        %774 = vmatprep.subr.mxu0 %v714
        %775 = vmatpush1.msra.mxu0 %v713
        %776 = vmatprep.subr.mxu0 %v712
        %777 = vmatpush1.msra.mxu0 %v711
        %778 = vmatprep.subr.mxu0 %v710
        %779 = vmatpush1.msra.mxu0 %v709
        %780 = vmatprep.subr.mxu0 0.0
        %781 = vmatpush2.msra.mxu0 0.0
        %782 = vmatprep.subr.mxu0 0.0
        %783 = vmatpush2.msra.mxu0 0.0
        %784 = vmatprep.subr.mxu0 0.0
        %785 = vmatpush2.msra.mxu0 0.0
        %786 = vmatprep.subr.mxu0 0.0
        %787 = vmatpush2.msra.mxu0 0.0
        %788 = vmatprep.subr.mxu0 0.0
        %789 = vmatpush2.msra.mxu0 0.0
        %790 = vmatprep.subr.mxu0 0.0
        %791 = vmatpush2.msra.mxu0 0.0
        %792 = vmatprep.subr.mxu0 0.0
        %793 = vmatpush2.msra.mxu0 0.0
        %794 = vmatprep.subr.mxu0 0.0
        %795 = vmatpush2.msra.mxu0 0.0
        %796 = vmatprep.subr.mxu0 0.0
        %797 = vmatpush2.msra.mxu0 0.0
        %798 = vmatprep.subr.mxu0 0.0
        %799 = vmatpush2.msra.mxu0 0.0
        %800 = vmatprep.subr.mxu0 0.0
        %801 = vmatpush2.msra.mxu0 0.0
        %802 = vmatprep.subr.mxu0 0.0
        %803 = vmatpush2.msra.mxu0 0.0
        %804 = vmatprep.subr.mxu0 0.0
        %805 = vmatpush2.msra.mxu0 0.0
        %806 = vmatprep.subr.mxu0 0.0
        %807 = vmatpush2.msra.mxu0 0.0
        %808 = vmatprep.subr.mxu0 0.0
        %809 = vmatpush2.msra.mxu0 0.0
        %810 = vmatprep.subr.mxu0 0.0
        %811 = vmatpush2.msra.mxu0 0.0
        %812 = vmatprep.mubr.f32.mxu0 0.0
        %813 = vmatmul.mubr.f32.gmra.mxu0 %v746
        %v814 = vpop.f32.mrf.mxu0
        %v815 = vadd.f32 %v655, %v814
        %v816 = vpop.f32.mrf.mxu0
        %v817 = vadd.f32 %v655, %v816
        %818 = vdwg.mxu0
        %819 = vst [vmem:[%s240] sm:$0xff] %v815
        %820 = vst [vmem:[%s240 + $0x8] sm:$0xff] %v817
        %s821 = sand.u32 %s140, 1
        %s822 = scalar_lea.sflag [#allocation4], %s821
        %s823 = sand.u32 %s140, 1
        %s824 = smul.addr %s823, 16
        %s825 = scalar_lea.vmem [#allocation5], %s824
        // Predicated region
        $region45: #{tpu_custom_call.1} parent=39 // pred_check
          %p826 = pneg %p150
        $region46: #{tpu_custom_call.1} parent=39 // pred_check_branch
          %828 = sbr.rel (%p826) target = $region48
        $region47: #{tpu_custom_call.1} parent=39 // pred_region
          %s830 = ssub.s32 256, 256
          %831 = vsyncadd %s822, %s830
          %s832 = smul.addr %s22, 2
          %s833 = smul.addr %s832, 128
          %s834 = scalar_lea.hbm %s5, %s833
          %s836 = sshll.u32 %s825, 4
          %s837 = int_to_ptr.vmem [resolvable:$true] %s836
          %839 = dma.vmem_to_hbm [thread:$0]  %s837, 256, %s834, %s822
        $region48: #{tpu_custom_call.1} parent=39 // pred_fallthru
          _
      $region40: #{tpu_custom_call.1} parent=5 // pred_fallthru
        _
      %p840 = scmp.le.s32.totalorder 2, %s17
      // Predicated region
      $region49: #{tpu_custom_call.1} parent=5 // pred_check
        %p841 = pneg %p840
      $region50: #{tpu_custom_call.1} parent=5 // pred_check_branch
        %843 = sbr.rel (%p841) target = $region52
      $region51: #{tpu_custom_call.1} parent=5 // pred_region
        %s844 = ssub.s32 %s17, 2
        // Predicated region
        $region53: #{tpu_custom_call.1} parent=51 // pred_check
          %p845 = pneg %p156
        $region54: #{tpu_custom_call.1} parent=51 // pred_check_branch
          %847 = sbr.rel (%p845) target = $region56
        $region55: #{tpu_custom_call.1} parent=51 // pred_region
          %s848 = sand.u32 %s141, 1
          %s849 = scalar_lea.sflag [#allocation4], %s848
          %s850 = sand.u32 %s141, 1
          %s851 = smul.addr %s850, 16
          %s852 = scalar_lea.vmem [#allocation5], %s851
          %853 = dma.done %s849, 256
        $region56: #{tpu_custom_call.1} parent=51 // pred_fallthru
          _
      $region52: #{tpu_custom_call.1} parent=5 // pred_fallthru
        _
    $region6: #{tpu_custom_call.1} parent=1 // loop_footer
      %s21 = sadd.s32 1, %s17
    $region7: #{tpu_custom_call.1} parent=1 // loop_footer_branch
      %16 = sbr.rel target = $region3
    $region8: #{tpu_custom_call.1} parent=1 // loop_exit
      _
    %854 = vsyncpa [#allocation3], 1
    %s855 = scalar_lea.sflag [#allocation3], 1
    %856 = vsyncpa %s855, 1
    %857 = vsyncpa [#allocation4], 1
    %s858 = scalar_lea.sflag [#allocation4], 1
    %859 = vsyncpa %s858, 1

</llo_original>
